<compile_context>
chip_gen: v7x
topology: tpu7x:2x2x1
jax: 0.10.0
libtpu: 0.0.40
codegen_flags: <defaults>
</compile_context>

<pallas_src>
import functools

import jax
import jax.numpy as jnp
from jax.experimental import pallas as pl
from jax.experimental.pallas import tpu as pltpu

HIDDEN = 64
LANE = 128
SUBLANE = 8


def _round_up(v, m):
    return (v + m - 1) // m * m


def _dual_mlp_kernel(x_ref, w1_ref, b1_ref, w2_ref, b2_ref, o_ref):
    # x_ref : (TB, D_in)   bf16      w1_ref: (D_in, H)  bf16   b1_ref: (1, H)     f32
    # w2_ref: (H, A_pad)   bf16      b2_ref: (1, A_pad) f32    o_ref : (TB, A_pad) f32
    x = x_ref[...]
    h = jnp.dot(x, w1_ref[...], preferred_element_type=jnp.float32) + b1_ref[...]
    h = jnp.maximum(h, 0.0)  # bias/ReLU kept in f32 (v5e has no bf16 VPU)
    out = jnp.dot(h.astype(jnp.bfloat16), w2_ref[...],
                  preferred_element_type=jnp.float32) + b2_ref[...]
    o_ref[...] = out  # lane-dense (A_pad = multiple of 128) -> unmasked vector stores


def _dual_mlp_pallas(x_bf16, w1s, b1s, w2s, b2s, *, tb):
    """x_bf16: (B_pad, D_in); w1s: (2, D_in, H); b1s: (2, 1, H);
    w2s: (2, H, A_pad); b2s: (2, 1, A_pad).  Returns (2, B_pad, A_pad) f32."""
    b_pad, d_in = x_bf16.shape
    h = w1s.shape[-1]
    a_pad = w2s.shape[-1]
    nb = b_pad // tb

    flops = 2 * 2 * b_pad * (d_in * h + h * a_pad)
    bytes_accessed = (x_bf16.size * 2 + w1s.size * 2 + w2s.size * 2
                      + b1s.size * 4 + b2s.size * 4 + 2 * b_pad * a_pad * 4)

    return pl.pallas_call(
        _dual_mlp_kernel,
        out_shape=jax.ShapeDtypeStruct((2, b_pad, a_pad), jnp.float32),
        grid=(2, nb),  # (network, batch tile)
        in_specs=[
            pl.BlockSpec((tb, d_in), lambda n, b: (b, 0)),          # x tile (shared)
            pl.BlockSpec((None, d_in, h), lambda n, b: (n, 0, 0)),  # W1 of net n
            pl.BlockSpec((None, 1, h), lambda n, b: (n, 0, 0)),     # b1 of net n
            pl.BlockSpec((None, h, a_pad), lambda n, b: (n, 0, 0)), # W2 of net n
            pl.BlockSpec((None, 1, a_pad), lambda n, b: (n, 0, 0)), # b2 of net n
        ],
        out_specs=pl.BlockSpec((None, tb, a_pad), lambda n, b: (n, b, 0)),
        compiler_params=pltpu.CompilerParams(
            dimension_semantics=("parallel", "parallel")),
        cost_estimate=pl.CostEstimate(flops=flops, transcendentals=0,
                                      bytes_accessed=bytes_accessed),
    )(x_bf16, w1s, b1s, w2s, b2s)


@functools.partial(jax.jit, static_argnames=("action_space",))
def _forward_both_impl(x, w1s, b1s, w2s, b2s, *, action_space):
    b, _ = x.shape
    tb = min(_round_up(b, SUBLANE), 256)
    b_pad = _round_up(b, tb)
    if b_pad != b:
        x = jnp.pad(x, ((0, b_pad - b), (0, 0)))
    out = _dual_mlp_pallas(x.astype(jnp.bfloat16), w1s, b1s, w2s, b2s, tb=tb)
    return out[0, :b, :action_space], out[1, :b, :action_space]


def pack_params(online, target, action_space):
    """One-time packing (outside the hot loop): stack online+target, cast weights to
    bf16 (half DMA bytes), zero-pad action dim to a lane-dense multiple of 128."""
    a_pad = max(LANE, _round_up(action_space, LANE))

    def pad_last(a):
        return jnp.pad(a, [(0, 0)] * (a.ndim - 1) + [(0, a_pad - a.shape[-1])])

    return {
        "w1": jnp.stack([online["w1"], target["w1"]]).astype(jnp.bfloat16),  # (2,D,H)
        "b1": jnp.stack([online["b1"], target["b1"]]).astype(jnp.float32),   # (2,1,H)
        "w2": pad_last(jnp.stack([online["w2"], target["w2"]])).astype(jnp.bfloat16),
        "b2": pad_last(jnp.stack([online["b2"], target["b2"]])).astype(jnp.float32),
        "action_space": int(action_space),
    }


def small_mlp_forward_both(x, packed):
    """Fused evaluation of BOTH nets in a single pallas_call -> (online_out, target_out)."""
    return _forward_both_impl(x, packed["w1"], packed["b1"], packed["w2"],
                              packed["b2"], action_space=packed["action_space"])


def small_mlp_forward(x, packed, model):
    """Semantics of SmallMLP.forward(x, model). The fused kernel computes both nets
    (free in this launch-bound regime); we return the requested one."""
    out_online, out_target = small_mlp_forward_both(x, packed)
    if model == "online":
        return out_online
    elif model == "target":
        return out_target
    raise ValueError(model)


def init_small_mlp(key, input_shape, action_space, hidden=HIDDEN):
    """Deterministic init mimicking PyTorch nn.Linear default U(-1/sqrt(fan_in), ...).
    Weights stored transposed vs. PyTorch: W1 (D_in, H), W2 (H, A)."""
    k1, k2, k3, k4 = jax.random.split(key, 4)
    lim1 = 1.0 / jnp.sqrt(input_shape)
    lim2 = 1.0 / jnp.sqrt(hidden)
    w1 = jax.random.uniform(k1, (input_shape, hidden), jnp.float32, -lim1, lim1)
    b1 = jax.random.uniform(k2, (1, hidden), jnp.float32, -lim1, lim1)
    w2 = jax.random.uniform(k3, (hidden, action_space), jnp.float32, -lim2, lim2)
    b2 = jax.random.uniform(k4, (1, action_space), jnp.float32, -lim2, lim2)
    online = {"w1": w1, "b1": b1, "w2": w2, "b2": b2}
    target = {k: v for k, v in online.items()}  # deepcopy semantics: identical values
    return online, target


if __name__ == "__main__":
    key = jax.random.PRNGKey(0)
    kx, kp = jax.random.split(key)

    batch, input_shape, action_space = 8, 32, 8
    x = jax.random.normal(kx, (batch, input_shape), jnp.float32)

    online, target = init_small_mlp(kp, input_shape, action_space)
    packed = pack_params(online, target, action_space)

    # single fused call -> both networks
    out_online, out_target = small_mlp_forward_both(x, packed)
    jax.block_until_ready((out_online, out_target))

    # reference with the same bf16-operand / f32-accumulate numerics as the kernel
    def ref_net(p):
        xb = x.astype(jnp.bfloat16)
        h = jnp.dot(xb, p["w1"].astype(jnp.bfloat16),
                    preferred_element_type=jnp.float32) + p["b1"]
        h = jnp.maximum(h, 0.0)
        return jnp.dot(h.astype(jnp.bfloat16), p["w2"].astype(jnp.bfloat16),
                       preferred_element_type=jnp.float32) + p["b2"]

    ref_online = ref_net(online)
    ref_f32 = jnp.maximum(x @ online["w1"] + online["b1"], 0.0) @ online["w2"] + online["b2"]

    assert out_online.shape == (batch, action_space)
    assert out_target.shape == (batch, action_space)
    assert jnp.allclose(out_online, ref_online, atol=1e-4, rtol=1e-4)
    assert jnp.allclose(out_online, ref_f32, atol=2.5e-1, rtol=5e-2)  # bf16 operands
    assert jnp.allclose(out_online, out_target)  # deepcopy => identical params

    # semantics-preserving accessor (module-style forward(x, model))
    assert jnp.allclose(small_mlp_forward(x, packed, "online"), out_online)
    assert jnp.allclose(small_mlp_forward(x, packed, "target"), out_target)

    print("KERNEL_OK")
</pallas_src>

<mosaic_0001>
module attributes {stable_mosaic.version = 11 : i64} {
  func.func @_dual_mlp_kernel(%arg0: i32, %arg1: i32, %arg2: memref<8x32xbf16, #tpu.memory_space<vmem>>, %arg3: memref<1x32x64xbf16, #tpu.memory_space<vmem>>, %arg4: memref<1x1x64xf32, #tpu.memory_space<vmem>>, %arg5: memref<1x64x128xbf16, #tpu.memory_space<vmem>>, %arg6: memref<1x1x128xf32, #tpu.memory_space<vmem>>, %arg7: memref<1x8x128xf32, #tpu.memory_space<vmem>>) attributes {dimension_semantics = [#tpu.dimension_semantics<parallel>, #tpu.dimension_semantics<parallel>], iteration_bounds = array<i64: 2, 1>, scalar_prefetch = 0 : i64, scratch_operands = 0 : i64, tpu.core_type = #tpu.core_type<tc>, window_params = [{transform_indices = @transform_0, window_bounds = array<i64: 8, 32>}, {transform_indices = @transform_1, window_bounds = array<i64: 1, 32, 64>}, {transform_indices = @transform_2, window_bounds = array<i64: 1, 1, 64>}, {transform_indices = @transform_3, window_bounds = array<i64: 1, 64, 128>}, {transform_indices = @transform_4, window_bounds = array<i64: 1, 1, 128>}, {transform_indices = @transform_5, window_bounds = array<i64: 1, 8, 128>}]} {
    %c0 = arith.constant 0 : index
    %c0_0 = arith.constant 0 : index
    %0 = vector.load %arg2[%c0, %c0_0] : memref<8x32xbf16, #tpu.memory_space<vmem>>, vector<8x32xbf16>
    %c0_1 = arith.constant 0 : index
    %c0_2 = arith.constant 0 : index
    %c0_3 = arith.constant 0 : index
    %1 = vector.load %arg3[%c0_1, %c0_2, %c0_3] : memref<1x32x64xbf16, #tpu.memory_space<vmem>>, vector<1x32x64xbf16>
    %2 = vector.shape_cast %1 : vector<1x32x64xbf16> to vector<32x64xbf16>
    %cst = arith.constant dense<0.000000e+00> : vector<8x64xf32>
    %3 = tpu.matmul %0, %2, %cst {dimension_numbers = #tpu.dot_dimension_numbers<[1], [0], [0], [1], [0, 0, 1, 1], [], []>} : vector<8x32xbf16>, vector<32x64xbf16>, vector<8x64xf32> -> vector<8x64xf32>
    %c0_4 = arith.constant 0 : index
    %c0_5 = arith.constant 0 : index
    %c0_6 = arith.constant 0 : index
    %4 = vector.load %arg4[%c0_4, %c0_5, %c0_6] : memref<1x1x64xf32, #tpu.memory_space<vmem>>, vector<1x1x64xf32>
    %5 = vector.shape_cast %4 : vector<1x1x64xf32> to vector<1x64xf32>
    %6 = vector.broadcast %5 : vector<1x64xf32> to vector<8x64xf32>
    %7 = arith.addf %3, %6 : vector<8x64xf32>
    %cst_7 = arith.constant 0.000000e+00 : f32
    %8 = vector.broadcast %cst_7 : f32 to vector<8x64xf32>
    %9 = arith.maximumf %7, %8 : vector<8x64xf32>
    %10 = arith.truncf %9 : vector<8x64xf32> to vector<8x64xbf16>
    %c0_8 = arith.constant 0 : index
    %c0_9 = arith.constant 0 : index
    %c0_10 = arith.constant 0 : index
    %11 = vector.load %arg5[%c0_8, %c0_9, %c0_10] : memref<1x64x128xbf16, #tpu.memory_space<vmem>>, vector<1x64x128xbf16>
    %12 = vector.shape_cast %11 : vector<1x64x128xbf16> to vector<64x128xbf16>
    %cst_11 = arith.constant dense<0.000000e+00> : vector<8x128xf32>
    %13 = tpu.matmul %10, %12, %cst_11 {dimension_numbers = #tpu.dot_dimension_numbers<[1], [0], [0], [1], [0, 0, 1, 1], [], []>} : vector<8x64xbf16>, vector<64x128xbf16>, vector<8x128xf32> -> vector<8x128xf32>
    %c0_12 = arith.constant 0 : index
    %c0_13 = arith.constant 0 : index
    %c0_14 = arith.constant 0 : index
    %14 = vector.load %arg6[%c0_12, %c0_13, %c0_14] : memref<1x1x128xf32, #tpu.memory_space<vmem>>, vector<1x1x128xf32>
    %15 = vector.shape_cast %14 : vector<1x1x128xf32> to vector<1x128xf32>
    %16 = vector.broadcast %15 : vector<1x128xf32> to vector<8x128xf32>
    %17 = arith.addf %13, %16 : vector<8x128xf32>
    %c0_15 = arith.constant 0 : index
    %c0_16 = arith.constant 0 : index
    %c0_17 = arith.constant 0 : index
    %18 = vector.load %arg7[%c0_15, %c0_16, %c0_17] : memref<1x8x128xf32, #tpu.memory_space<vmem>>, vector<1x8x128xf32>
    %19 = vector.shape_cast %18 : vector<1x8x128xf32> to vector<8x128xf32>
    %20 = vector.shape_cast %17 : vector<8x128xf32> to vector<1x8x128xf32>
    tpu.vector_store %arg7[%c0_15, %c0_16, %c0_17], %20 {strides = array<i32>} : memref<1x8x128xf32, #tpu.memory_space<vmem>>, vector<1x8x128xf32>,
    return
  }
  func.func @transform_0(%arg0: i32, %arg1: i32) -> (i32, i32) {
    %c0_i32 = arith.constant 0 : i32
    %c0_i32_0 = arith.constant 0 : i32
    return %arg1, %c0_i32 : i32, i32
  }
  func.func @transform_1(%arg0: i32, %arg1: i32) -> (i32, i32, i32) {
    %c0_i32 = arith.constant 0 : i32
    %c0_i32_0 = arith.constant 0 : i32
    %c0_i32_1 = arith.constant 0 : i32
    return %arg0, %c0_i32, %c0_i32_0 : i32, i32, i32
  }
  func.func @transform_2(%arg0: i32, %arg1: i32) -> (i32, i32, i32) {
    %c0_i32 = arith.constant 0 : i32
    %c0_i32_0 = arith.constant 0 : i32
    %c0_i32_1 = arith.constant 0 : i32
    return %arg0, %c0_i32, %c0_i32_0 : i32, i32, i32
  }
  func.func @transform_3(%arg0: i32, %arg1: i32) -> (i32, i32, i32) {
    %c0_i32 = arith.constant 0 : i32
    %c0_i32_0 = arith.constant 0 : i32
    %c0_i32_1 = arith.constant 0 : i32
    return %arg0, %c0_i32, %c0_i32_0 : i32, i32, i32
  }
  func.func @transform_4(%arg0: i32, %arg1: i32) -> (i32, i32, i32) {
    %c0_i32 = arith.constant 0 : i32
    %c0_i32_0 = arith.constant 0 : i32
    %c0_i32_1 = arith.constant 0 : i32
    return %arg0, %c0_i32, %c0_i32_0 : i32, i32, i32
  }
  func.func @transform_5(%arg0: i32, %arg1: i32) -> (i32, i32, i32) {
    %c0_i32 = arith.constant 0 : i32
    %c0_i32_0 = arith.constant 0 : i32
    return %arg0, %arg1, %c0_i32 : i32, i32, i32
  }
}

</mosaic_0001>

<llo_original>
// kernel: _forward_both_impl.1
$region0: #{_forward_both_impl.1}
  #allocation0 [shape = 'u32[]', space=smem, size = 0x4, offset = 0x4, fixed_abs, tag = 'smem constant byte address 0x4 - core index']
  #allocation1 [shape = 'u32[144,128]{1,0:T(1,128)}', space=vmem, size = 0x12000, scoped, tag = 'internal scratch']
  %s0 = inlined_call_operand.vmem [shape: bf16[8,32], index: 0, kind: input, shape index: {}]
  %s1 = inlined_call_operand.hbm [shape: bf16[2,32,64], index: 1, kind: input, shape index: {}]
  %s2 = inlined_call_operand.vmem [shape: f32[2,1,64], index: 2, kind: input, shape index: {}]
  %s3 = inlined_call_operand.hbm [shape: bf16[2,64,128], index: 3, kind: input, shape index: {}]
  %s4 = inlined_call_operand.vmem [shape: f32[2,1,128], index: 4, kind: input, shape index: {}]
  %s5 = inlined_call_operand.vmem [shape: f32[2,8,128], index: 5, kind: output, shape index: {}]
  %s6 = sld [smem:[#allocation0]]
  $region61: #{_forward_both_impl.1} parent=0
    _
  %s8 = ssub.s32 1, %s6
  %s9 = scalar_select 0, %s8, %s6
  $region1: #{_forward_both_impl.1} parent=0
    #allocation2 [shape = 'u8[16384]{0}', space=vmem, size = 0x4000, scoped, tag = 'input window, operand 1']
    #allocation3 [shape = 's32[2]{0}', space=sflag, size = 0x8, scoped, tag = 'scoped memory for _forward_both_impl.1']
    #allocation4 [shape = 'u8[32768]{0}', space=vmem, size = 0x8000, scoped, tag = 'input window, operand 3']
    #allocation5 [shape = 's32[2]{0}', space=sflag, size = 0x8, scoped, tag = 'scoped memory for _forward_both_impl.1']
    %10 = vsyncpa [#allocation3], 0
    %s11 = scalar_lea.sflag [#allocation3], 1
    %12 = vsyncpa %s11, 0
    %13 = vsyncpa [#allocation5], 0
    %s14 = scalar_lea.sflag [#allocation5], 1
    %15 = vsyncpa %s14, 0
    loop: start=0, step=1, limit=4
    $region2: #{_forward_both_impl.1} parent=1 // loop_pre_header
      _
    $region3: #{_forward_both_impl.1} parent=1 // loop_header
      %s17 = sphi 0, %s21
      %p18 = scmp.ge.s32.totalorder %s17, 4
      %s24 = sphi 0, %s36
      %s25 = sphi 0, %s32
      %s26 = sphi 0, %s24
      %s27 = sphi 0, %s25
      %s28 = sphi 0, %s26
      %s29 = sphi 0, %s27
      %s39 = sphi 0, %s41
      %s42 = sphi 0, %s39
      %s43 = sphi 0, %s42
      %s59 = sphi 0, %s43
      %s65 = sphi 0, %s67
      %s68 = sphi 0, %s65
      %s69 = sphi 0, %s68
      %s85 = sphi 0, %s69
      %s91 = sphi 0, %s93
      %s94 = sphi 0, %s91
      %s95 = sphi 0, %s94
      %s111 = sphi 0, %s95
      %s117 = sphi 0, %s119
      %s120 = sphi 0, %s117
      %s121 = sphi 0, %s120
      %s137 = sphi 0, %s121
      %s143 = sphi 0, %s145
      %s146 = sphi 0, %s143
      %s147 = sphi 0, %s146
      %s163 = sphi 0, %s147
      %s171 = sphi 0, %s173
      %s174 = sphi 0, %s171
      %s175 = sphi 0, %s174
      %s191 = sphi 0, %s175
    $region4: #{_forward_both_impl.1} parent=1 // loop_header_branch
      %20 = sbr.rel (%p18) target = $region8
    $region5: #{_forward_both_impl.1} parent=1 // loop_body
      %s22 = ssub.s32 %s17, 1
      %s23 = ssub.s32 %s17, 2
      %s30 = sadd.s32 1, %s25
      %p31 = scmp.ge.s32.totalorder %s30, 1
      %s32 = scalar_select %p31, 0, %s30
      %s33 = sadd.s32 1, %s24
      %s34 = scalar_select %p31, %s33, %s24
      %p35 = scmp.ge.s32.totalorder %s34, 2
      %s36 = scalar_select %p35, 0, %s34
      %s37 = ssub.s32 %s25, %s32
      %p38 = scmp.eq.s32.totalorder %s37, 0
      %s40 = sadd.s32 %s39, 1
      %s41 = scalar_select %p38, %s39, %s40
      %p44 = pneg %p38
      %p45 = scmp.eq.s32.totalorder %s17, 1
      %p46 = por %p44, %p45
      %p47 = scmp.ne.s32.totalorder %s39, %s42
      %p48 = scmp.eq.s32.totalorder %s17, 0
      %p49 = por %p47, %p48
      %p50 = scmp.ne.s32.totalorder %s39, %s42
      %p51 = scmp.eq.s32.totalorder %s22, 1
      %p52 = por %p50, %p51
      %p53 = scmp.ne.s32.totalorder %s42, %s43
      %p54 = scmp.eq.s32.totalorder %s22, 0
      %p55 = por %p53, %p54
      %p56 = scmp.ne.s32.totalorder %s42, %s43
      %p57 = scmp.eq.s32.totalorder %s23, 1
      %p58 = por %p56, %p57
      %p60 = scmp.ne.s32.totalorder %s43, %s59
      %p61 = scmp.eq.s32.totalorder %s23, 0
      %p62 = por %p60, %p61
      %s63 = ssub.s32 %s24, %s36
      %p64 = scmp.eq.s32.totalorder %s63, 0
      %s66 = sadd.s32 %s65, 1
      %s67 = scalar_select %p64, %s65, %s66
      %p70 = pneg %p64
      %p71 = scmp.eq.s32.totalorder %s17, 1
      %p72 = por %p70, %p71
      %p73 = scmp.ne.s32.totalorder %s65, %s68
      %p74 = scmp.eq.s32.totalorder %s17, 0
      %p75 = por %p73, %p74
      %p76 = scmp.ne.s32.totalorder %s65, %s68
      %p77 = scmp.eq.s32.totalorder %s22, 1
      %p78 = por %p76, %p77
      %p79 = scmp.ne.s32.totalorder %s68, %s69
      %p80 = scmp.eq.s32.totalorder %s22, 0
      %p81 = por %p79, %p80
      %p82 = scmp.ne.s32.totalorder %s68, %s69
      %p83 = scmp.eq.s32.totalorder %s23, 1
      %p84 = por %p82, %p83
      %p86 = scmp.ne.s32.totalorder %s69, %s85
      %p87 = scmp.eq.s32.totalorder %s23, 0
      %p88 = por %p86, %p87
      %s89 = ssub.s32 %s24, %s36
      %p90 = scmp.eq.s32.totalorder %s89, 0
      %s92 = sadd.s32 %s91, 1
      %s93 = scalar_select %p90, %s91, %s92
      %p96 = pneg %p90
      %p97 = scmp.eq.s32.totalorder %s17, 1
      %p98 = por %p96, %p97
      %p99 = scmp.ne.s32.totalorder %s91, %s94
      %p100 = scmp.eq.s32.totalorder %s17, 0
      %p101 = por %p99, %p100
      %p102 = scmp.ne.s32.totalorder %s91, %s94
      %p103 = scmp.eq.s32.totalorder %s22, 1
      %p104 = por %p102, %p103
      %p105 = scmp.ne.s32.totalorder %s94, %s95
      %p106 = scmp.eq.s32.totalorder %s22, 0
      %p107 = por %p105, %p106
      %p108 = scmp.ne.s32.totalorder %s94, %s95
      %p109 = scmp.eq.s32.totalorder %s23, 1
      %p110 = por %p108, %p109
      %p112 = scmp.ne.s32.totalorder %s95, %s111
      %p113 = scmp.eq.s32.totalorder %s23, 0
      %p114 = por %p112, %p113
      %s115 = ssub.s32 %s24, %s36
      %p116 = scmp.eq.s32.totalorder %s115, 0
      %s118 = sadd.s32 %s117, 1
      %s119 = scalar_select %p116, %s117, %s118
      %p122 = pneg %p116
      %p123 = scmp.eq.s32.totalorder %s17, 1
      %p124 = por %p122, %p123
      %p125 = scmp.ne.s32.totalorder %s117, %s120
      %p126 = scmp.eq.s32.totalorder %s17, 0
      %p127 = por %p125, %p126
      %p128 = scmp.ne.s32.totalorder %s117, %s120
      %p129 = scmp.eq.s32.totalorder %s22, 1
      %p130 = por %p128, %p129
      %p131 = scmp.ne.s32.totalorder %s120, %s121
      %p132 = scmp.eq.s32.totalorder %s22, 0
      %p133 = por %p131, %p132
      %p134 = scmp.ne.s32.totalorder %s120, %s121
      %p135 = scmp.eq.s32.totalorder %s23, 1
      %p136 = por %p134, %p135
      %p138 = scmp.ne.s32.totalorder %s121, %s137
      %p139 = scmp.eq.s32.totalorder %s23, 0
      %p140 = por %p138, %p139
      %s141 = ssub.s32 %s24, %s36
      %p142 = scmp.eq.s32.totalorder %s141, 0
      %s144 = sadd.s32 %s143, 1
      %s145 = scalar_select %p142, %s143, %s144
      %p148 = pneg %p142
      %p149 = scmp.eq.s32.totalorder %s17, 1
      %p150 = por %p148, %p149
      %p151 = scmp.ne.s32.totalorder %s143, %s146
      %p152 = scmp.eq.s32.totalorder %s17, 0
      %p153 = por %p151, %p152
      %p154 = scmp.ne.s32.totalorder %s143, %s146
      %p155 = scmp.eq.s32.totalorder %s22, 1
      %p156 = por %p154, %p155
      %p157 = scmp.ne.s32.totalorder %s146, %s147
      %p158 = scmp.eq.s32.totalorder %s22, 0
      %p159 = por %p157, %p158
      %p160 = scmp.ne.s32.totalorder %s146, %s147
      %p161 = scmp.eq.s32.totalorder %s23, 1
      %p162 = por %p160, %p161
      %p164 = scmp.ne.s32.totalorder %s147, %s163
      %p165 = scmp.eq.s32.totalorder %s23, 0
      %p166 = por %p164, %p165
      %s167 = ssub.s32 %s24, %s36
      %s168 = ssub.s32 %s25, %s32
      %s169 = sor.u32 %s167, %s168
      %p170 = scmp.eq.s32.totalorder %s169, 0
      %s172 = sadd.s32 %s171, 1
      %s173 = scalar_select %p170, %s171, %s172
      %p176 = pneg %p170
      %p177 = scmp.eq.s32.totalorder %s17, 1
      %p178 = por %p176, %p177
      %p179 = scmp.ne.s32.totalorder %s171, %s174
      %p180 = scmp.eq.s32.totalorder %s17, 0
      %p181 = por %p179, %p180
      %p182 = scmp.ne.s32.totalorder %s171, %s174
      %p183 = scmp.eq.s32.totalorder %s22, 1
      %p184 = por %p182, %p183
      %p185 = scmp.ne.s32.totalorder %s174, %s175
      %p186 = scmp.eq.s32.totalorder %s22, 0
      %p187 = por %p185, %p186
      %p188 = scmp.ne.s32.totalorder %s174, %s175
      %p189 = scmp.eq.s32.totalorder %s23, 1
      %p190 = por %p188, %p189
      %p192 = scmp.ne.s32.totalorder %s175, %s191
      %p193 = scmp.eq.s32.totalorder %s23, 0
      %p194 = por %p192, %p193
      %p195 = scmp.le.s32.totalorder 1, %s17
      %p196 = scmp.lt.s32.totalorder %s17, 3
      %p197 = pnand %p195, %p196
      %p198 = pneg %p197
      // Predicated region
      $region9: #{_forward_both_impl.1} parent=5 // pred_check
        _
      $region10: #{_forward_both_impl.1} parent=5 // pred_check_branch
        %200 = sbr.rel (%p197) target = $region12
      $region11: #{_forward_both_impl.1} parent=5 // pred_region
        %s201 = ssub.s32 %s17, 1
        // Predicated region
        $region13: #{_forward_both_impl.1} parent=11 // pred_check
          %p202 = pneg %p55
        $region14: #{_forward_both_impl.1} parent=11 // pred_check_branch
          %204 = sbr.rel (%p202) target = $region16
        $region15: #{_forward_both_impl.1} parent=11 // pred_region
          %p205 = scmp.lt.s32.totalorder %s27, 0
          %s206 = scalar_select %p205, %s27, 0
          %s207 = smul.addr %s206, 4
          %s208 = scalar_lea.vmem %s0, %s207
        $region16: #{_forward_both_impl.1} parent=11 // pred_fallthru
          _
      $region12: #{_forward_both_impl.1} parent=5 // pred_fallthru
        _
      %p209 = scmp.lt.s32.totalorder %s17, 2
      // Predicated region
      $region17: #{_forward_both_impl.1} parent=5 // pred_check
        %p210 = pneg %p209
      $region18: #{_forward_both_impl.1} parent=5 // pred_check_branch
        %212 = sbr.rel (%p210) target = $region20
      $region19: #{_forward_both_impl.1} parent=5 // pred_region
        // Predicated region
        $region21: #{_forward_both_impl.1} parent=19 // pred_check
          %p213 = pneg %p75
        $region22: #{_forward_both_impl.1} parent=19 // pred_check_branch
          %215 = sbr.rel (%p213) target = $region24
        $region23: #{_forward_both_impl.1} parent=19 // pred_region
          %s216 = sand.u32 %s65, 1
          %s217 = scalar_lea.sflag [#allocation3], %s216
          %s218 = sand.u32 %s65, 1
          %s219 = smul.addr %s218, 16
          %s220 = scalar_lea.vmem [#allocation2], %s219
          %s222 = ssub.s32 256, 256
          %223 = vsyncadd %s217, %s222
          %s224 = smul.addr %s24, 4
          %s225 = smul.addr %s224, 64
          %s226 = scalar_lea.hbm %s1, %s225
          %s227 = sshll.u32 %s220, 4
          %s228 = int_to_ptr.vmem [resolvable:$true] %s227
          %233 = dma.hbm_to_vmem [thread:$0]  %s226, 256, %s228, %s217, 64, 64, 4
        $region24: #{_forward_both_impl.1} parent=19 // pred_fallthru
          _
        // Predicated region
        $region25: #{_forward_both_impl.1} parent=19 // pred_check
          %p234 = pneg %p101
        $region26: #{_forward_both_impl.1} parent=19 // pred_check_branch
          %236 = sbr.rel (%p234) target = $region28
        $region27: #{_forward_both_impl.1} parent=19 // pred_region
          %p237 = scmp.lt.s32.totalorder %s24, 1
          %s238 = scalar_select %p237, %s24, 1
          %s239 = scalar_lea.vmem %s2, %s238
        $region28: #{_forward_both_impl.1} parent=19 // pred_fallthru
          _
        // Predicated region
        $region29: #{_forward_both_impl.1} parent=19 // pred_check
          %p240 = pneg %p127
        $region30: #{_forward_both_impl.1} parent=19 // pred_check_branch
          %242 = sbr.rel (%p240) target = $region32
        $region31: #{_forward_both_impl.1} parent=19 // pred_region
          %s243 = sand.u32 %s117, 1
          %s244 = scalar_lea.sflag [#allocation5], %s243
          %s245 = sand.u32 %s117, 1
          %s246 = smul.addr %s245, 32
          %s247 = scalar_lea.vmem [#allocation4], %s246
          %s249 = ssub.s32 512, 512
          %250 = vsyncadd %s244, %s249
          %s251 = smul.addr %s24, 8
          %s252 = smul.addr %s251, 64
          %s253 = scalar_lea.hbm %s3, %s252
          %s254 = sshll.u32 %s247, 4
          %s255 = int_to_ptr.vmem [resolvable:$true] %s254
          %260 = dma.hbm_to_vmem [thread:$0]  %s253, 512, %s255, %s244, 64, 64, 4
        $region32: #{_forward_both_impl.1} parent=19 // pred_fallthru
          _
        // Predicated region
        $region33: #{_forward_both_impl.1} parent=19 // pred_check
          %p261 = pneg %p153
        $region34: #{_forward_both_impl.1} parent=19 // pred_check_branch
          %263 = sbr.rel (%p261) target = $region36
        $region35: #{_forward_both_impl.1} parent=19 // pred_region
          %p264 = scmp.lt.s32.totalorder %s24, 1
          %s265 = scalar_select %p264, %s24, 1
          %s266 = scalar_lea.vmem %s4, %s265
        $region36: #{_forward_both_impl.1} parent=19 // pred_fallthru
          _
      $region20: #{_forward_both_impl.1} parent=5 // pred_fallthru
        _
      %p267 = scmp.le.s32.totalorder 1, %s17
      %p268 = scmp.lt.s32.totalorder %s17, 3
      %p269 = pnand %p267, %p268
      %p270 = pneg %p269
      // Predicated region
      $region37: #{_forward_both_impl.1} parent=5 // pred_check
        _
      $region38: #{_forward_both_impl.1} parent=5 // pred_check_branch
        %272 = sbr.rel (%p269) target = $region40
      $region39: #{_forward_both_impl.1} parent=5 // pred_region
        %s273 = ssub.s32 %s17, 1
        %s274 = sand.u32 %s68, 1
        %s275 = scalar_lea.sflag [#allocation3], %s274
        %s276 = sand.u32 %s68, 1
        %s277 = smul.addr %s276, 16
        %s278 = scalar_lea.vmem [#allocation2], %s277
        // Predicated region
        $region41: #{_forward_both_impl.1} parent=39 // pred_check
          %p279 = pneg %p81
        $region42: #{_forward_both_impl.1} parent=39 // pred_check_branch
          %281 = sbr.rel (%p279) target = $region44
        $region43: #{_forward_both_impl.1} parent=39 // pred_region
          %282 = dma.done %s275, 256
        $region44: #{_forward_both_impl.1} parent=39 // pred_fallthru
          _
        %s283 = sand.u32 %s120, 1
        %s284 = scalar_lea.sflag [#allocation5], %s283
        %s285 = sand.u32 %s120, 1
        %s286 = smul.addr %s285, 32
        %s287 = scalar_lea.vmem [#allocation4], %s286
        // Predicated region
        $region45: #{_forward_both_impl.1} parent=39 // pred_check
          %p288 = pneg %p133
        $region46: #{_forward_both_impl.1} parent=39 // pred_check_branch
          %290 = sbr.rel (%p288) target = $region48
        $region47: #{_forward_both_impl.1} parent=39 // pred_region
          %291 = dma.done %s284, 512
        $region48: #{_forward_both_impl.1} parent=39 // pred_fallthru
          _
        %p292 = scmp.lt.s32.totalorder %s27, 0
        %s293 = scalar_select %p292, %s27, 0
        %s294 = smul.addr %s293, 4
        %s295 = scalar_lea.vmem %s0, %s294
        %p296 = pneg %p55
        %p297 = pneg %p52
        %s298 = sand.u32 %s68, 1
        %s299 = scalar_lea.sflag [#allocation3], %s298
        %s300 = sand.u32 %s68, 1
        %s301 = smul.addr %s300, 16
        %s302 = scalar_lea.vmem [#allocation2], %s301
        %p303 = pneg %p81
        %p304 = pneg %p78
        %p305 = scmp.lt.s32.totalorder %s26, 1
        %s306 = scalar_select %p305, %s26, 1
        %s307 = scalar_lea.vmem %s2, %s306
        %p308 = pneg %p107
        %p309 = pneg %p104
        %s310 = sand.u32 %s120, 1
        %s311 = scalar_lea.sflag [#allocation5], %s310
        %s312 = sand.u32 %s120, 1
        %s313 = smul.addr %s312, 32
        %s314 = scalar_lea.vmem [#allocation4], %s313
        %p315 = pneg %p133
        %p316 = pneg %p130
        %p317 = scmp.lt.s32.totalorder %s26, 1
        %s318 = scalar_select %p317, %s26, 1
        %s319 = scalar_lea.vmem %s4, %s318
        %p320 = pneg %p159
        %p321 = pneg %p156
        %p322 = pneg %p187
        %p323 = pneg %p184
        %p324 = scmp.lt.s32.totalorder %s26, 1
        %s325 = scalar_select %p324, %s26, 1
        %p326 = scmp.lt.s32.totalorder %s27, 0
        %s327 = scalar_select %p326, %s27, 0
        %s328 = sadd.s32 %s327, %s325
        %s329 = smul.addr %s328, 8
        %s330 = scalar_lea.vmem %s5, %s329
        %p331 = scmp.lt.s32.totalorder %s27, 0
        %s332 = scalar_select %p331, %s27, 0
        %s333 = smul.addr %s332, 4
        %s334 = scalar_lea.vmem %s0, %s333
        %p335 = scmp.lt.s32.totalorder %s26, 1
        %s336 = scalar_select %p335, %s26, 1
        %s337 = scalar_lea.vmem %s2, %s336
        %p338 = scmp.lt.s32.totalorder %s26, 1
        %s339 = scalar_select %p338, %s26, 1
        %s340 = scalar_lea.vmem %s4, %s339
        %p341 = scmp.lt.s32.totalorder %s26, 1
        %s342 = scalar_select %p341, %s26, 1
        %p343 = scmp.lt.s32.totalorder %s27, 0
        %s344 = scalar_select %p343, %s27, 0
        %s345 = sadd.s32 %s344, %s342
        %s346 = smul.addr %s345, 8
        %s347 = scalar_lea.vmem %s5, %s346
        %v349 = vld [vmem:[%s334] sm:$0xf]
        %v350 = vld [vmem:[%s278] sm:$0xf]
        %v351 = vld [vmem:[%s278 + $0x4] sm:$0xf]
        %v352 = vld [vmem:[%s278 + $0x8] sm:$0xf]
        %v353 = vld [vmem:[%s278 + $0xc] sm:$0xf]
        %v354 = vld [vmem:[%s337] sm:$0x1]
        %v356 = vlaneseq
        %v357 = vshrl.u32 %v356, 7
        %v358 = vsub.s32 0, %v357
        %v359 = vrot.slane %v354, %v358
        %v365 = vunpack.c.l.b16 %v350
        %v366 = vunpack.c.l.b16 %v351
        %v367 = vunpack.c.l.b16 %v352
        %v368 = vunpack.c.l.b16 %v353
        %v369 = vpack.c.b16 %v366, %v365
        %v370 = vpack.c.b16 %v368, %v367
        %vm373 = vcmask 261120
        %v375 = vsel %vm373, %v349, 0
        %377 = vmatprep.subr.bf16.mxu0 0
        %378 = vmatpush1.bf16.msra.mxu0 %v369
        %379 = vmatprep.subr.bf16.mxu0 0
        %380 = vmatpush1.bf16.msra.mxu0 %v370
        %381 = vmatprep.subr.bf16.mxu0 0
        %382 = vmatpush1.bf16.msra.mxu0 0
        %383 = vmatprep.subr.bf16.mxu0 0
        %384 = vmatpush1.bf16.msra.mxu0 0
        %385 = vmatprep.subr.bf16.mxu0 0
        %386 = vmatpush1.bf16.msra.mxu0 0
        %387 = vmatprep.subr.bf16.mxu0 0
        %388 = vmatpush1.bf16.msra.mxu0 0
        %389 = vmatprep.subr.bf16.mxu0 0
        %390 = vmatpush1.bf16.msra.mxu0 0
        %391 = vmatprep.subr.bf16.mxu0 0
        %392 = vmatpush1.bf16.msra.mxu0 0
        %393 = vmatprep.subr.bf16.mxu0 0
        %394 = vmatpush1.bf16.msra.mxu0 0
        %395 = vmatprep.subr.bf16.mxu0 0
        %396 = vmatpush1.bf16.msra.mxu0 0
        %397 = vmatprep.subr.bf16.mxu0 0
        %398 = vmatpush1.bf16.msra.mxu0 0
        %399 = vmatprep.subr.bf16.mxu0 0
        %400 = vmatpush1.bf16.msra.mxu0 0
        %401 = vmatprep.subr.bf16.mxu0 0
        %402 = vmatpush1.bf16.msra.mxu0 0
        %403 = vmatprep.subr.bf16.mxu0 0
        %404 = vmatpush1.bf16.msra.mxu0 0
        %405 = vmatprep.subr.bf16.mxu0 0
        %406 = vmatpush1.bf16.msra.mxu0 0
        %407 = vmatprep.subr.bf16.mxu0 0
        %408 = vmatpush1.bf16.msra.mxu0 0
        %409 = vmatprep.mubr.bf16.mxu0 0
        %410 = vmatmul.mubr.bf16.gmra.mrb[0].mxu0 %v375
        %v411 = vpop.f32.mrb[0].mxu0
        %v412 = vadd.f32 %v359, %v411
        %v413 = vpop.f32.mrb[0].mxu0
        %v414 = vpop.f32.mrb[0].mxu0
        %v415 = vpop.f32.mrb[0].mxu0
        %416 = vdwg.mxu0
        %v417 = vmax.f32 %v412, 0.0
        %v418 = vpack.c.bf16 %v417, %v417
        %v419 = vld [vmem:[%s287] sm:$0xf]
        %v420 = vld [vmem:[%s287 + $0x4] sm:$0xf]
        %v421 = vld [vmem:[%s287 + $0x8] sm:$0xf]
        %v422 = vld [vmem:[%s287 + $0xc] sm:$0xf]
        %v423 = vld [vmem:[%s287 + $0x10] sm:$0xf]
        %v424 = vld [vmem:[%s287 + $0x14] sm:$0xf]
        %v425 = vld [vmem:[%s287 + $0x18] sm:$0xf]
        %v426 = vld [vmem:[%s287 + $0x1c] sm:$0xf]
        %v427 = vld [vmem:[%s340] sm:$0x1]
        %v429 = vlaneseq
        %v430 = vshrl.u32 %v429, 7
        %v431 = vsub.s32 0, %v430
        %v432 = vrot.slane %v427, %v431
        %v442 = vunpack.c.l.b16 %v419
        %v443 = vunpack.c.l.b16 %v420
        %v444 = vunpack.c.l.b16 %v421
        %v445 = vunpack.c.l.b16 %v422
        %v446 = vunpack.c.l.b16 %v423
        %v447 = vunpack.c.l.b16 %v424
        %v448 = vunpack.c.l.b16 %v425
        %v449 = vunpack.c.l.b16 %v426
        %v450 = vpack.c.b16 %v443, %v442
        %v451 = vpack.c.b16 %v445, %v444
        %v452 = vpack.c.b16 %v447, %v446
        %v453 = vpack.c.b16 %v449, %v448
        %vm458 = vcmask 523264
        %v460 = vsel %vm458, %v418, 0
        %462 = vmatprep.subr.bf16.mxu0 0
        %463 = vmatpush1.bf16.msra.mxu0 %v450
        %464 = vmatprep.subr.bf16.mxu0 0
        %465 = vmatpush1.bf16.msra.mxu0 %v451
        %466 = vmatprep.subr.bf16.mxu0 0
        %467 = vmatpush1.bf16.msra.mxu0 %v452
        %468 = vmatprep.subr.bf16.mxu0 0
        %469 = vmatpush1.bf16.msra.mxu0 %v453
        %470 = vmatprep.subr.bf16.mxu0 0
        %471 = vmatpush1.bf16.msra.mxu0 0
        %472 = vmatprep.subr.bf16.mxu0 0
        %473 = vmatpush1.bf16.msra.mxu0 0
        %474 = vmatprep.subr.bf16.mxu0 0
        %475 = vmatpush1.bf16.msra.mxu0 0
        %476 = vmatprep.subr.bf16.mxu0 0
        %477 = vmatpush1.bf16.msra.mxu0 0
        %478 = vmatprep.subr.bf16.mxu0 0
        %479 = vmatpush1.bf16.msra.mxu0 0
        %480 = vmatprep.subr.bf16.mxu0 0
        %481 = vmatpush1.bf16.msra.mxu0 0
        %482 = vmatprep.subr.bf16.mxu0 0
        %483 = vmatpush1.bf16.msra.mxu0 0
        %484 = vmatprep.subr.bf16.mxu0 0
        %485 = vmatpush1.bf16.msra.mxu0 0
        %486 = vmatprep.subr.bf16.mxu0 0
        %487 = vmatpush1.bf16.msra.mxu0 0
        %488 = vmatprep.subr.bf16.mxu0 0
        %489 = vmatpush1.bf16.msra.mxu0 0
        %490 = vmatprep.subr.bf16.mxu0 0
        %491 = vmatpush1.bf16.msra.mxu0 0
        %492 = vmatprep.subr.bf16.mxu0 0
        %493 = vmatpush1.bf16.msra.mxu0 0
        %494 = vmatprep.mubr.bf16.mxu0 0
        %495 = vmatmul.mubr.bf16.gmra.mrb[0].mxu0 %v460
        %v496 = vpop.f32.mrb[0].mxu0
        %v497 = vadd.f32 %v432, %v496
        %v498 = vpop.f32.mrb[0].mxu0
        %v499 = vpop.f32.mrb[0].mxu0
        %v500 = vpop.f32.mrb[0].mxu0
        %501 = vdwg.mxu0
        %502 = vst [vmem:[%s347] sm:$0xff] %v497
        %p503 = scmp.lt.s32.totalorder %s26, 1
        %s504 = scalar_select %p503, %s26, 1
        %p505 = scmp.lt.s32.totalorder %s27, 0
        %s506 = scalar_select %p505, %s27, 0
        %s507 = sadd.s32 %s506, %s504
        %s508 = smul.addr %s507, 8
        %s509 = scalar_lea.vmem %s5, %s508
        // Predicated region
        $region49: #{_forward_both_impl.1} parent=39 // pred_check
          %p510 = pneg %p184
        $region50: #{_forward_both_impl.1} parent=39 // pred_check_branch
          %512 = sbr.rel (%p510) target = $region52
        $region51: #{_forward_both_impl.1} parent=39 // pred_region
          _
        $region52: #{_forward_both_impl.1} parent=39 // pred_fallthru
          _
      $region40: #{_forward_both_impl.1} parent=5 // pred_fallthru
        _
      %p513 = scmp.le.s32.totalorder 2, %s17
      // Predicated region
      $region53: #{_forward_both_impl.1} parent=5 // pred_check
        %p514 = pneg %p513
      $region54: #{_forward_both_impl.1} parent=5 // pred_check_branch
        %516 = sbr.rel (%p514) target = $region56
      $region55: #{_forward_both_impl.1} parent=5 // pred_region
        %s517 = ssub.s32 %s17, 2
        // Predicated region
        $region57: #{_forward_both_impl.1} parent=55 // pred_check
          %p518 = pneg %p190
        $region58: #{_forward_both_impl.1} parent=55 // pred_check_branch
          %520 = sbr.rel (%p518) target = $region60
        $region59: #{_forward_both_impl.1} parent=55 // pred_region
          %p521 = scmp.lt.s32.totalorder %s28, 1
          %s522 = scalar_select %p521, %s28, 1
          %p523 = scmp.lt.s32.totalorder %s29, 0
          %s524 = scalar_select %p523, %s29, 0
          %s525 = sadd.s32 %s524, %s522
          %s526 = smul.addr %s525, 8
          %s527 = scalar_lea.vmem %s5, %s526
        $region60: #{_forward_both_impl.1} parent=55 // pred_fallthru
          _
      $region56: #{_forward_both_impl.1} parent=5 // pred_fallthru
        _
    $region6: #{_forward_both_impl.1} parent=1 // loop_footer
      %s21 = sadd.s32 1, %s17
    $region7: #{_forward_both_impl.1} parent=1 // loop_footer_branch
      %16 = sbr.rel target = $region3
    $region8: #{_forward_both_impl.1} parent=1 // loop_exit
      _
    %528 = vsyncpa [#allocation3], 1
    %s529 = scalar_lea.sflag [#allocation3], 1
    %530 = vsyncpa %s529, 1
    %531 = vsyncpa [#allocation5], 1
    %s532 = scalar_lea.sflag [#allocation5], 1
    %533 = vsyncpa %s532, 1

</llo_original>
